<compile_context>
chip_gen: v6e
topology: v6e:2x2x1
jax: 0.10.0
libtpu: 0.0.40
codegen_flags: <defaults>
</compile_context>

<pallas_src>
import functools

import jax
import jax.numpy as jnp
from jax.experimental import pallas as pl
from jax.experimental.pallas import tpu as pltpu


def _bottleneck_kernel(x_ref, wcat_ref, bs_ref, b1_ref, w2_ref, mask_ref,
                       b2_ref, w3_ref, b3_ref, o_ref, *, width):
    """One image per grid step.  All activations are (channels, H*W)."""
    hw = x_ref.shape[2]
    cout = bs_ref.shape[0]
    planes = b1_ref.shape[0]

    x = x_ref[0].astype(jnp.bfloat16)                         # (Cin, HW)

    # conv1 (1x1) and the 1x1 shortcut share the same RHS -> one fused matmul.
    fused = jnp.dot(wcat_ref[...], x,
                    preferred_element_type=jnp.float32)       # (Cout+P, HW)
    sc = fused[:cout] + bs_ref[...]                            # (Cout, HW)
    h1 = jnp.maximum(fused[cout:cout + planes] + b1_ref[...], 0.0)   # (P, HW)
    h1b = h1.astype(jnp.bfloat16)

    # conv2 (3x3, padding=1): 9 taps as matmuls on the unshifted h1, then
    # shift each result along the flattened spatial axis (XLU roll) and mask
    # out positions whose source pixel crossed the image border.
    acc = jnp.zeros((planes, hw), jnp.float32)
    for t in range(9):
        dy, dx = t // 3 - 1, t % 3 - 1
        tap = jnp.dot(w2_ref[t], h1b,
                      preferred_element_type=jnp.float32)      # (P, HW)
        if dy == 0 and dx == 0:
            acc = acc + tap
        else:
            shift = (-(dy * width + dx)) % hw
            rolled = pltpu.roll(tap, shift=shift, axis=1)
            acc = acc + rolled * mask_ref[pl.ds(t, 1), :]
    h2 = jnp.maximum(acc + b2_ref[...], 0.0).astype(jnp.bfloat16)    # (P, HW)

    # conv3 (1x1) + bias, add shortcut, final relu.
    h3 = jnp.dot(w3_ref[...], h2,
                 preferred_element_type=jnp.float32) + b3_ref[...]   # (Cout, HW)
    o_ref[0] = jnp.maximum(h3 + sc, 0.0).astype(o_ref.dtype)


def _border_masks(h, w):
    """(9, H*W) float32: per 3x3 tap, 1.0 where the shifted source pixel is
    inside the image, 0.0 where the flat roll wrapped across a border."""
    f = jnp.arange(h * w, dtype=jnp.int32)
    y, x = f // w, f % w
    masks = []
    for t in range(9):
        dy, dx = t // 3 - 1, t % 3 - 1
        ok = (y + dy >= 0) & (y + dy < h) & (x + dx >= 0) & (x + dx < w)
        masks.append(ok.astype(jnp.float32))
    return jnp.stack(masks, axis=0)


def fold_params(p):
    """One-time prep: fold eval-mode BN scales into bf16 conv weights and fuse
    conv1 / shortcut weights; keep biases separate (f32, per-channel)."""
    w1f = (p["w1"] * p["s1"][:, None]).astype(jnp.bfloat16)           # (P, Cin)
    wsf = (p["ws"] * p["ss"][:, None]).astype(jnp.bfloat16)           # (Cout, Cin)
    wcat = jnp.concatenate([wsf, w1f], axis=0)                        # (Cout+P, Cin)
    planes = p["w2"].shape[2]
    w2f = (p["w2"] * p["s2"][None, None, :, None]).astype(jnp.bfloat16)
    w2f = w2f.reshape(9, planes, planes)                              # (9, P, P)
    w3f = (p["w3"] * p["s3"][:, None]).astype(jnp.bfloat16)           # (Cout, P)
    return dict(
        wcat=wcat, w2=w2f, w3=w3f,
        b1=p["b1"].reshape(-1, 1), b2=p["b2"].reshape(-1, 1),
        b3=p["b3"].reshape(-1, 1), bs=p["bs"].reshape(-1, 1))


def bottleneck_forward(x_nchw, folded):
    n, cin, h, w = x_nchw.shape
    cout = folded["w3"].shape[0]
    hw = h * w

    x2d = x_nchw.reshape(n, cin, hw)          # NCHW -> (N, C, H*W); no transpose
    masks = _border_masks(h, w)

    ordered = (folded["wcat"], folded["bs"], folded["b1"], folded["w2"],
               masks, folded["b2"], folded["w3"], folded["b3"])

    def const_spec(a):
        nd = a.ndim
        return pl.BlockSpec(a.shape, lambda i, _nd=nd: (0,) * _nd)

    in_specs = [pl.BlockSpec((1, cin, hw), lambda i: (i, 0, 0))]
    in_specs += [const_spec(a) for a in ordered]

    out = pl.pallas_call(
        functools.partial(_bottleneck_kernel, width=w),
        out_shape=jax.ShapeDtypeStruct((n, cout, hw), x_nchw.dtype),
        grid=(n,),
        in_specs=in_specs,
        out_specs=pl.BlockSpec((1, cout, hw), lambda i: (i, 0, 0)),
        compiler_params=pltpu.CompilerParams(
            dimension_semantics=("parallel",),
            vmem_limit_bytes=32 * 1024 * 1024),
    )(x2d, *ordered)
    return out.reshape(n, cout, h, w)


def init_params(key, in_planes, planes, expansion=4):
    out_planes = expansion * planes
    keys = jax.random.split(key, 8)
    eps = 1e-5

    def folded_bn(k, c):
        kg, kb, km, kv = jax.random.split(k, 4)
        gamma = 1.0 + 0.1 * jax.random.normal(kg, (c,), jnp.float32)
        beta = 0.1 * jax.random.normal(kb, (c,), jnp.float32)
        mean = 0.1 * jax.random.normal(km, (c,), jnp.float32)
        var = jnp.abs(jax.random.normal(kv, (c,), jnp.float32)) + 0.5
        scale = gamma / jnp.sqrt(var + eps)
        bias = beta - mean * scale
        return scale, bias

    # weights stored as (out_channels, in_channels[, taps]) for the (C, HW) layout
    w1 = 0.2 * jax.random.normal(keys[0], (planes, in_planes), jnp.float32)
    w2 = 0.2 * jax.random.normal(keys[1], (3, 3, planes, planes), jnp.float32)
    w3 = 0.2 * jax.random.normal(keys[2], (out_planes, planes), jnp.float32)
    ws = 0.2 * jax.random.normal(keys[3], (out_planes, in_planes), jnp.float32)
    s1, b1 = folded_bn(keys[4], planes)
    s2, b2 = folded_bn(keys[5], planes)
    s3, b3 = folded_bn(keys[6], out_planes)
    ss, bs = folded_bn(keys[7], out_planes)
    return dict(w1=w1, s1=s1, b1=b1, w2=w2, s2=s2, b2=b2,
                w3=w3, s3=s3, b3=b3, ws=ws, ss=ss, bs=bs)


def reference_nchw(x, p):
    """Pure-JAX f32 reference of the eval-mode Bottleneck forward (NCHW)."""
    def conv1x1(a, w):                        # w: (Cout, Cin)
        return jnp.einsum("nchw,oc->nohw", a, w)

    def bn(a, s, b):
        return a * s[None, :, None, None] + b[None, :, None, None]

    h_, w_ = x.shape[2], x.shape[3]
    h1 = jnp.maximum(bn(conv1x1(x, p["w1"]), p["s1"], p["b1"]), 0.0)
    hp = jnp.pad(h1, ((0, 0), (0, 0), (1, 1), (1, 1)))
    acc = 0.0
    for ky in range(3):
        for kx in range(3):
            acc = acc + jnp.einsum("nchw,oc->nohw",
                                   hp[:, :, ky:ky + h_, kx:kx + w_],
                                   p["w2"][ky, kx])
    h2 = jnp.maximum(bn(acc, p["s2"], p["b2"]), 0.0)
    h3 = bn(conv1x1(h2, p["w3"]), p["s3"], p["b3"])
    sc = bn(conv1x1(x, p["ws"]), p["ss"], p["bs"])
    return jnp.maximum(h3 + sc, 0.0)


if __name__ == "__main__":
    key = jax.random.PRNGKey(0)
    k_x, k_p = jax.random.split(key)

    # small shapes consistent with the module: NCHW x = (2, 4, 16, 16),
    # in_planes=4, planes=4 -> output channels = expansion*planes = 16.
    n, cin, h, w = 2, 4, 16, 16
    planes = 4

    x = jax.random.normal(k_x, (n, cin, h, w), jnp.float32)
    params = init_params(k_p, cin, planes)
    folded = fold_params(params)              # one-time BN -> weight folding

    out = bottleneck_forward(x, folded)
    out = jax.block_until_ready(out)

    ref = reference_nchw(x, params)
    assert out.shape == (n, 4 * planes, h, w), out.shape
    # MXU operands are bf16 (f32 accumulation) -> loosened tolerance vs the
    # all-f32 reference.
    assert jnp.allclose(out, ref, rtol=5e-2, atol=5e-2), "mismatch vs reference"

    print("KERNEL_OK")
</pallas_src>

<mosaic_0001>
module attributes {stable_mosaic.version = 11 : i64} {
  func.func @_bottleneck_kernel(%arg0: i32, %arg1: memref<1x4x256xf32, #tpu.memory_space<vmem>>, %arg2: memref<20x4xbf16, #tpu.memory_space<vmem>>, %arg3: memref<16x1xf32, #tpu.memory_space<vmem>>, %arg4: memref<4x1xf32, #tpu.memory_space<vmem>>, %arg5: memref<9x4x4xbf16, #tpu.memory_space<vmem>>, %arg6: memref<9x256xf32, #tpu.memory_space<vmem>>, %arg7: memref<4x1xf32, #tpu.memory_space<vmem>>, %arg8: memref<16x4xbf16, #tpu.memory_space<vmem>>, %arg9: memref<16x1xf32, #tpu.memory_space<vmem>>, %arg10: memref<1x16x256xf32, #tpu.memory_space<vmem>>) attributes {dimension_semantics = [#tpu.dimension_semantics<parallel>], iteration_bounds = array<i64: 2>, scalar_prefetch = 0 : i64, scratch_operands = 0 : i64, tpu.core_type = #tpu.core_type<tc>, window_params = [{transform_indices = @transform_0, window_bounds = array<i64: 1, 4, 256>}, {pipeline_mode = #tpu.pipeline_mode<synchronous>, transform_indices = @transform_1, window_bounds = array<i64: 20, 4>}, {pipeline_mode = #tpu.pipeline_mode<synchronous>, transform_indices = @transform_2, window_bounds = array<i64: 16, 1>}, {pipeline_mode = #tpu.pipeline_mode<synchronous>, transform_indices = @transform_3, window_bounds = array<i64: 4, 1>}, {pipeline_mode = #tpu.pipeline_mode<synchronous>, transform_indices = @transform_4, window_bounds = array<i64: 9, 4, 4>}, {pipeline_mode = #tpu.pipeline_mode<synchronous>, transform_indices = @transform_5, window_bounds = array<i64: 9, 256>}, {pipeline_mode = #tpu.pipeline_mode<synchronous>, transform_indices = @transform_6, window_bounds = array<i64: 4, 1>}, {pipeline_mode = #tpu.pipeline_mode<synchronous>, transform_indices = @transform_7, window_bounds = array<i64: 16, 4>}, {pipeline_mode = #tpu.pipeline_mode<synchronous>, transform_indices = @transform_8, window_bounds = array<i64: 16, 1>}, {transform_indices = @transform_9, window_bounds = array<i64: 1, 16, 256>}]} {
    %c0 = arith.constant 0 : index
    %c0_0 = arith.constant 0 : index
    %c0_1 = arith.constant 0 : index
    %0 = vector.load %arg1[%c0, %c0_0, %c0_1] : memref<1x4x256xf32, #tpu.memory_space<vmem>>, vector<1x4x256xf32>
    %1 = vector.shape_cast %0 : vector<1x4x256xf32> to vector<4x256xf32>
    %2 = arith.truncf %1 : vector<4x256xf32> to vector<4x256xbf16>
    %c0_2 = arith.constant 0 : index
    %c0_3 = arith.constant 0 : index
    %3 = vector.load %arg2[%c0_2, %c0_3] : memref<20x4xbf16, #tpu.memory_space<vmem>>, vector<20x4xbf16>
    %cst = arith.constant dense<0.000000e+00> : vector<20x256xf32>
    %4 = tpu.matmul %3, %2, %cst {dimension_numbers = #tpu.dot_dimension_numbers<[1], [0], [0], [1], [0, 0, 1, 1], [], []>} : vector<20x4xbf16>, vector<4x256xbf16>, vector<20x256xf32> -> vector<20x256xf32>
    %5 = vector.extract_strided_slice %4 {offsets = [0, 0], sizes = [16, 256], strides = [1, 1]} : vector<20x256xf32> to vector<16x256xf32>
    %c0_4 = arith.constant 0 : index
    %c0_5 = arith.constant 0 : index
    %6 = vector.load %arg3[%c0_4, %c0_5] : memref<16x1xf32, #tpu.memory_space<vmem>>, vector<16x1xf32>
    %7 = vector.broadcast %6 : vector<16x1xf32> to vector<16x256xf32>
    %8 = arith.addf %5, %7 : vector<16x256xf32>
    %9 = vector.extract_strided_slice %4 {offsets = [16, 0], sizes = [4, 256], strides = [1, 1]} : vector<20x256xf32> to vector<4x256xf32>
    %c0_6 = arith.constant 0 : index
    %c0_7 = arith.constant 0 : index
    %10 = vector.load %arg4[%c0_6, %c0_7] : memref<4x1xf32, #tpu.memory_space<vmem>>, vector<4x1xf32>
    %11 = vector.broadcast %10 : vector<4x1xf32> to vector<4x256xf32>
    %12 = arith.addf %9, %11 : vector<4x256xf32>
    %cst_8 = arith.constant 0.000000e+00 : f32
    %13 = vector.broadcast %cst_8 : f32 to vector<4x256xf32>
    %14 = arith.maximumf %12, %13 : vector<4x256xf32>
    %15 = arith.truncf %14 : vector<4x256xf32> to vector<4x256xbf16>
    %cst_9 = arith.constant 0.000000e+00 : f32
    %16 = vector.broadcast %cst_9 : f32 to vector<4x256xf32>
    %c0_10 = arith.constant 0 : index
    %c0_11 = arith.constant 0 : index
    %c0_12 = arith.constant 0 : index
    %17 = vector.load %arg5[%c0_10, %c0_11, %c0_12] : memref<9x4x4xbf16, #tpu.memory_space<vmem>>, vector<1x4x4xbf16>
    %18 = vector.shape_cast %17 : vector<1x4x4xbf16> to vector<4x4xbf16>
    %cst_13 = arith.constant dense<0.000000e+00> : vector<4x256xf32>
    %19 = tpu.matmul %18, %15, %cst_13 {dimension_numbers = #tpu.dot_dimension_numbers<[1], [0], [0], [1], [0, 0, 1, 1], [], []>} : vector<4x4xbf16>, vector<4x256xbf16>, vector<4x256xf32> -> vector<4x256xf32>
    %c17_i32 = arith.constant 17 : i32
    %20 = tpu.dynamic_rotate %19 by %c17_i32 dim 1 : vector<4x256xf32>, i32 -> vector<4x256xf32>
    %c0_14 = arith.constant 0 : index
    %c0_15 = arith.constant 0 : index
    %21 = vector.load %arg6[%c0_14, %c0_15] : memref<9x256xf32, #tpu.memory_space<vmem>>, vector<1x256xf32>
    %22 = vector.broadcast %21 : vector<1x256xf32> to vector<4x256xf32>
    %23 = arith.mulf %20, %22 : vector<4x256xf32>
    %24 = arith.addf %16, %23 : vector<4x256xf32>
    %c1 = arith.constant 1 : index
    %c0_16 = arith.constant 0 : index
    %c0_17 = arith.constant 0 : index
    %25 = vector.load %arg5[%c1, %c0_16, %c0_17] : memref<9x4x4xbf16, #tpu.memory_space<vmem>>, vector<1x4x4xbf16>
    %26 = vector.shape_cast %25 : vector<1x4x4xbf16> to vector<4x4xbf16>
    %cst_18 = arith.constant dense<0.000000e+00> : vector<4x256xf32>
    %27 = tpu.matmul %26, %15, %cst_18 {dimension_numbers = #tpu.dot_dimension_numbers<[1], [0], [0], [1], [0, 0, 1, 1], [], []>} : vector<4x4xbf16>, vector<4x256xbf16>, vector<4x256xf32> -> vector<4x256xf32>
    %c16_i32 = arith.constant 16 : i32
    %28 = tpu.dynamic_rotate %27 by %c16_i32 dim 1 : vector<4x256xf32>, i32 -> vector<4x256xf32>
    %c1_19 = arith.constant 1 : index
    %c0_20 = arith.constant 0 : index
    %29 = vector.load %arg6[%c1_19, %c0_20] : memref<9x256xf32, #tpu.memory_space<vmem>>, vector<1x256xf32>
    %30 = vector.broadcast %29 : vector<1x256xf32> to vector<4x256xf32>
    %31 = arith.mulf %28, %30 : vector<4x256xf32>
    %32 = arith.addf %24, %31 : vector<4x256xf32>
    %c2 = arith.constant 2 : index
    %c0_21 = arith.constant 0 : index
    %c0_22 = arith.constant 0 : index
    %33 = vector.load %arg5[%c2, %c0_21, %c0_22] : memref<9x4x4xbf16, #tpu.memory_space<vmem>>, vector<1x4x4xbf16>
    %34 = vector.shape_cast %33 : vector<1x4x4xbf16> to vector<4x4xbf16>
    %cst_23 = arith.constant dense<0.000000e+00> : vector<4x256xf32>
    %35 = tpu.matmul %34, %15, %cst_23 {dimension_numbers = #tpu.dot_dimension_numbers<[1], [0], [0], [1], [0, 0, 1, 1], [], []>} : vector<4x4xbf16>, vector<4x256xbf16>, vector<4x256xf32> -> vector<4x256xf32>
    %c15_i32 = arith.constant 15 : i32
    %36 = tpu.dynamic_rotate %35 by %c15_i32 dim 1 : vector<4x256xf32>, i32 -> vector<4x256xf32>
    %c2_24 = arith.constant 2 : index
    %c0_25 = arith.constant 0 : index
    %37 = vector.load %arg6[%c2_24, %c0_25] : memref<9x256xf32, #tpu.memory_space<vmem>>, vector<1x256xf32>
    %38 = vector.broadcast %37 : vector<1x256xf32> to vector<4x256xf32>
    %39 = arith.mulf %36, %38 : vector<4x256xf32>
    %40 = arith.addf %32, %39 : vector<4x256xf32>
    %c3 = arith.constant 3 : index
    %c0_26 = arith.constant 0 : index
    %c0_27 = arith.constant 0 : index
    %41 = vector.load %arg5[%c3, %c0_26, %c0_27] : memref<9x4x4xbf16, #tpu.memory_space<vmem>>, vector<1x4x4xbf16>
    %42 = vector.shape_cast %41 : vector<1x4x4xbf16> to vector<4x4xbf16>
    %cst_28 = arith.constant dense<0.000000e+00> : vector<4x256xf32>
    %43 = tpu.matmul %42, %15, %cst_28 {dimension_numbers = #tpu.dot_dimension_numbers<[1], [0], [0], [1], [0, 0, 1, 1], [], []>} : vector<4x4xbf16>, vector<4x256xbf16>, vector<4x256xf32> -> vector<4x256xf32>
    %c1_i32 = arith.constant 1 : i32
    %44 = tpu.dynamic_rotate %43 by %c1_i32 dim 1 : vector<4x256xf32>, i32 -> vector<4x256xf32>
    %c3_29 = arith.constant 3 : index
    %c0_30 = arith.constant 0 : index
    %45 = vector.load %arg6[%c3_29, %c0_30] : memref<9x256xf32, #tpu.memory_space<vmem>>, vector<1x256xf32>
    %46 = vector.broadcast %45 : vector<1x256xf32> to vector<4x256xf32>
    %47 = arith.mulf %44, %46 : vector<4x256xf32>
    %48 = arith.addf %40, %47 : vector<4x256xf32>
    %c4 = arith.constant 4 : index
    %c0_31 = arith.constant 0 : index
    %c0_32 = arith.constant 0 : index
    %49 = vector.load %arg5[%c4, %c0_31, %c0_32] : memref<9x4x4xbf16, #tpu.memory_space<vmem>>, vector<1x4x4xbf16>
    %50 = vector.shape_cast %49 : vector<1x4x4xbf16> to vector<4x4xbf16>
    %cst_33 = arith.constant dense<0.000000e+00> : vector<4x256xf32>
    %51 = tpu.matmul %50, %15, %cst_33 {dimension_numbers = #tpu.dot_dimension_numbers<[1], [0], [0], [1], [0, 0, 1, 1], [], []>} : vector<4x4xbf16>, vector<4x256xbf16>, vector<4x256xf32> -> vector<4x256xf32>
    %52 = arith.addf %48, %51 : vector<4x256xf32>
    %c5 = arith.constant 5 : index
    %c0_34 = arith.constant 0 : index
    %c0_35 = arith.constant 0 : index
    %53 = vector.load %arg5[%c5, %c0_34, %c0_35] : memref<9x4x4xbf16, #tpu.memory_space<vmem>>, vector<1x4x4xbf16>
    %54 = vector.shape_cast %53 : vector<1x4x4xbf16> to vector<4x4xbf16>
    %cst_36 = arith.constant dense<0.000000e+00> : vector<4x256xf32>
    %55 = tpu.matmul %54, %15, %cst_36 {dimension_numbers = #tpu.dot_dimension_numbers<[1], [0], [0], [1], [0, 0, 1, 1], [], []>} : vector<4x4xbf16>, vector<4x256xbf16>, vector<4x256xf32> -> vector<4x256xf32>
    %c255_i32 = arith.constant 255 : i32
    %56 = tpu.dynamic_rotate %55 by %c255_i32 dim 1 : vector<4x256xf32>, i32 -> vector<4x256xf32>
    %c5_37 = arith.constant 5 : index
    %c0_38 = arith.constant 0 : index
    %57 = vector.load %arg6[%c5_37, %c0_38] : memref<9x256xf32, #tpu.memory_space<vmem>>, vector<1x256xf32>
    %58 = vector.broadcast %57 : vector<1x256xf32> to vector<4x256xf32>
    %59 = arith.mulf %56, %58 : vector<4x256xf32>
    %60 = arith.addf %52, %59 : vector<4x256xf32>
    %c6 = arith.constant 6 : index
    %c0_39 = arith.constant 0 : index
    %c0_40 = arith.constant 0 : index
    %61 = vector.load %arg5[%c6, %c0_39, %c0_40] : memref<9x4x4xbf16, #tpu.memory_space<vmem>>, vector<1x4x4xbf16>
    %62 = vector.shape_cast %61 : vector<1x4x4xbf16> to vector<4x4xbf16>
    %cst_41 = arith.constant dense<0.000000e+00> : vector<4x256xf32>
    %63 = tpu.matmul %62, %15, %cst_41 {dimension_numbers = #tpu.dot_dimension_numbers<[1], [0], [0], [1], [0, 0, 1, 1], [], []>} : vector<4x4xbf16>, vector<4x256xbf16>, vector<4x256xf32> -> vector<4x256xf32>
    %c241_i32 = arith.constant 241 : i32
    %64 = tpu.dynamic_rotate %63 by %c241_i32 dim 1 : vector<4x256xf32>, i32 -> vector<4x256xf32>
    %c6_42 = arith.constant 6 : index
    %c0_43 = arith.constant 0 : index
    %65 = vector.load %arg6[%c6_42, %c0_43] : memref<9x256xf32, #tpu.memory_space<vmem>>, vector<1x256xf32>
    %66 = vector.broadcast %65 : vector<1x256xf32> to vector<4x256xf32>
    %67 = arith.mulf %64, %66 : vector<4x256xf32>
    %68 = arith.addf %60, %67 : vector<4x256xf32>
    %c7 = arith.constant 7 : index
    %c0_44 = arith.constant 0 : index
    %c0_45 = arith.constant 0 : index
    %69 = vector.load %arg5[%c7, %c0_44, %c0_45] : memref<9x4x4xbf16, #tpu.memory_space<vmem>>, vector<1x4x4xbf16>
    %70 = vector.shape_cast %69 : vector<1x4x4xbf16> to vector<4x4xbf16>
    %cst_46 = arith.constant dense<0.000000e+00> : vector<4x256xf32>
    %71 = tpu.matmul %70, %15, %cst_46 {dimension_numbers = #tpu.dot_dimension_numbers<[1], [0], [0], [1], [0, 0, 1, 1], [], []>} : vector<4x4xbf16>, vector<4x256xbf16>, vector<4x256xf32> -> vector<4x256xf32>
    %c240_i32 = arith.constant 240 : i32
    %72 = tpu.dynamic_rotate %71 by %c240_i32 dim 1 : vector<4x256xf32>, i32 -> vector<4x256xf32>
    %c7_47 = arith.constant 7 : index
    %c0_48 = arith.constant 0 : index
    %73 = vector.load %arg6[%c7_47, %c0_48] : memref<9x256xf32, #tpu.memory_space<vmem>>, vector<1x256xf32>
    %74 = vector.broadcast %73 : vector<1x256xf32> to vector<4x256xf32>
    %75 = arith.mulf %72, %74 : vector<4x256xf32>
    %76 = arith.addf %68, %75 : vector<4x256xf32>
    %c8 = arith.constant 8 : index
    %c0_49 = arith.constant 0 : index
    %c0_50 = arith.constant 0 : index
    %77 = vector.load %arg5[%c8, %c0_49, %c0_50] : memref<9x4x4xbf16, #tpu.memory_space<vmem>>, vector<1x4x4xbf16>
    %78 = vector.shape_cast %77 : vector<1x4x4xbf16> to vector<4x4xbf16>
    %cst_51 = arith.constant dense<0.000000e+00> : vector<4x256xf32>
    %79 = tpu.matmul %78, %15, %cst_51 {dimension_numbers = #tpu.dot_dimension_numbers<[1], [0], [0], [1], [0, 0, 1, 1], [], []>} : vector<4x4xbf16>, vector<4x256xbf16>, vector<4x256xf32> -> vector<4x256xf32>
    %c239_i32 = arith.constant 239 : i32
    %80 = tpu.dynamic_rotate %79 by %c239_i32 dim 1 : vector<4x256xf32>, i32 -> vector<4x256xf32>
    %c8_52 = arith.constant 8 : index
    %c0_53 = arith.constant 0 : index
    %81 = vector.load %arg6[%c8_52, %c0_53] : memref<9x256xf32, #tpu.memory_space<vmem>>, vector<1x256xf32>
    %82 = vector.broadcast %81 : vector<1x256xf32> to vector<4x256xf32>
    %83 = arith.mulf %80, %82 : vector<4x256xf32>
    %84 = arith.addf %76, %83 : vector<4x256xf32>
    %c0_54 = arith.constant 0 : index
    %c0_55 = arith.constant 0 : index
    %85 = vector.load %arg7[%c0_54, %c0_55] : memref<4x1xf32, #tpu.memory_space<vmem>>, vector<4x1xf32>
    %86 = vector.broadcast %85 : vector<4x1xf32> to vector<4x256xf32>
    %87 = arith.addf %84, %86 : vector<4x256xf32>
    %cst_56 = arith.constant 0.000000e+00 : f32
    %88 = vector.broadcast %cst_56 : f32 to vector<4x256xf32>
    %89 = arith.maximumf %87, %88 : vector<4x256xf32>
    %90 = arith.truncf %89 : vector<4x256xf32> to vector<4x256xbf16>
    %c0_57 = arith.constant 0 : index
    %c0_58 = arith.constant 0 : index
    %91 = vector.load %arg8[%c0_57, %c0_58] : memref<16x4xbf16, #tpu.memory_space<vmem>>, vector<16x4xbf16>
    %cst_59 = arith.constant dense<0.000000e+00> : vector<16x256xf32>
    %92 = tpu.matmul %91, %90, %cst_59 {dimension_numbers = #tpu.dot_dimension_numbers<[1], [0], [0], [1], [0, 0, 1, 1], [], []>} : vector<16x4xbf16>, vector<4x256xbf16>, vector<16x256xf32> -> vector<16x256xf32>
    %c0_60 = arith.constant 0 : index
    %c0_61 = arith.constant 0 : index
    %93 = vector.load %arg9[%c0_60, %c0_61] : memref<16x1xf32, #tpu.memory_space<vmem>>, vector<16x1xf32>
    %94 = vector.broadcast %93 : vector<16x1xf32> to vector<16x256xf32>
    %95 = arith.addf %92, %94 : vector<16x256xf32>
    %96 = arith.addf %95, %8 : vector<16x256xf32>
    %cst_62 = arith.constant 0.000000e+00 : f32
    %97 = vector.broadcast %cst_62 : f32 to vector<16x256xf32>
    %98 = arith.maximumf %96, %97 : vector<16x256xf32>
    %c0_63 = arith.constant 0 : index
    %c0_64 = arith.constant 0 : index
    %c0_65 = arith.constant 0 : index
    %99 = vector.load %arg10[%c0_63, %c0_64, %c0_65] : memref<1x16x256xf32, #tpu.memory_space<vmem>>, vector<1x16x256xf32>
    %100 = vector.shape_cast %99 : vector<1x16x256xf32> to vector<16x256xf32>
    %101 = vector.shape_cast %98 : vector<16x256xf32> to vector<1x16x256xf32>
    tpu.vector_store %arg10[%c0_63, %c0_64, %c0_65], %101 {strides = array<i32>} : memref<1x16x256xf32, #tpu.memory_space<vmem>>, vector<1x16x256xf32>,
    return
  }
  func.func @transform_0(%arg0: i32) -> (i32, i32, i32) {
    %c0_i32 = arith.constant 0 : i32
    %c0_i32_0 = arith.constant 0 : i32
    %c0_i32_1 = arith.constant 0 : i32
    return %arg0, %c0_i32, %c0_i32_0 : i32, i32, i32
  }
  func.func @transform_1(%arg0: i32) -> (i32, i32) {
    %c0_i32 = arith.constant 0 : i32
    %c0_i32_0 = arith.constant 0 : i32
    %c0_i32_1 = arith.constant 0 : i32
    return %c0_i32, %c0_i32_0 : i32, i32
  }
  func.func @transform_2(%arg0: i32) -> (i32, i32) {
    %c0_i32 = arith.constant 0 : i32
    %c0_i32_0 = arith.constant 0 : i32
    %c0_i32_1 = arith.constant 0 : i32
    return %c0_i32, %c0_i32_0 : i32, i32
  }
  func.func @transform_3(%arg0: i32) -> (i32, i32) {
    %c0_i32 = arith.constant 0 : i32
    %c0_i32_0 = arith.constant 0 : i32
    %c0_i32_1 = arith.constant 0 : i32
    return %c0_i32, %c0_i32_0 : i32, i32
  }
  func.func @transform_4(%arg0: i32) -> (i32, i32, i32) {
    %c0_i32 = arith.constant 0 : i32
    %c0_i32_0 = arith.constant 0 : i32
    %c0_i32_1 = arith.constant 0 : i32
    %c0_i32_2 = arith.constant 0 : i32
    return %c0_i32, %c0_i32_0, %c0_i32_1 : i32, i32, i32
  }
  func.func @transform_5(%arg0: i32) -> (i32, i32) {
    %c0_i32 = arith.constant 0 : i32
    %c0_i32_0 = arith.constant 0 : i32
    %c0_i32_1 = arith.constant 0 : i32
    return %c0_i32, %c0_i32_0 : i32, i32
  }
  func.func @transform_6(%arg0: i32) -> (i32, i32) {
    %c0_i32 = arith.constant 0 : i32
    %c0_i32_0 = arith.constant 0 : i32
    %c0_i32_1 = arith.constant 0 : i32
    return %c0_i32, %c0_i32_0 : i32, i32
  }
  func.func @transform_7(%arg0: i32) -> (i32, i32) {
    %c0_i32 = arith.constant 0 : i32
    %c0_i32_0 = arith.constant 0 : i32
    %c0_i32_1 = arith.constant 0 : i32
    return %c0_i32, %c0_i32_0 : i32, i32
  }
  func.func @transform_8(%arg0: i32) -> (i32, i32) {
    %c0_i32 = arith.constant 0 : i32
    %c0_i32_0 = arith.constant 0 : i32
    %c0_i32_1 = arith.constant 0 : i32
    return %c0_i32, %c0_i32_0 : i32, i32
  }
  func.func @transform_9(%arg0: i32) -> (i32, i32, i32) {
    %c0_i32 = arith.constant 0 : i32
    %c0_i32_0 = arith.constant 0 : i32
    %c0_i32_1 = arith.constant 0 : i32
    return %arg0, %c0_i32, %c0_i32_0 : i32, i32, i32
  }
}

</mosaic_0001>

<llo_original>
// kernel: tpu_custom_call.1
$region0: #{tpu_custom_call.1}
  #allocation0 [shape = 'u32[]', space=smem, size = 0x4, offset = 0x4, fixed_abs, tag = 'smem constant byte address 0x4 - core index']
  #allocation1 [shape = 'u32[144,128]{1,0:T(1,128)}', space=vmem, size = 0x12000, scoped, tag = 'internal scratch']
  %s0 = inlined_call_operand.vmem [shape: f32[2,4,256], index: 0, kind: input, shape index: {}]
  %s1 = inlined_call_operand.vmem [shape: bf16[20,4], index: 1, kind: input, shape index: {}]
  %s2 = inlined_call_operand.vmem [shape: f32[16,1], index: 2, kind: input, shape index: {}]
  %s3 = inlined_call_operand.vmem [shape: f32[4,1], index: 3, kind: input, shape index: {}]
  %s4 = inlined_call_operand.vmem [shape: bf16[9,4,4], index: 4, kind: input, shape index: {}]
  %s5 = inlined_call_operand.vmem [shape: f32[9,256], index: 5, kind: input, shape index: {}]
  %s6 = inlined_call_operand.vmem [shape: f32[4,1], index: 6, kind: input, shape index: {}]
  %s7 = inlined_call_operand.vmem [shape: bf16[16,4], index: 7, kind: input, shape index: {}]
  %s8 = inlined_call_operand.vmem [shape: f32[16,1], index: 8, kind: input, shape index: {}]
  %s9 = inlined_call_operand.hbm [shape: f32[2,16,256], index: 9, kind: output, shape index: {}]
  %s10 = sld [smem:[#allocation0]]
  $region69: #{tpu_custom_call.1} parent=0
    _
  %s12 = ssub.s32 1, %s10
  %s13 = scalar_select 0, %s12, %s10
  $region1: #{tpu_custom_call.1} parent=0
    #allocation2 [shape = 'u8[32768]{0}', space=vmem, size = 0x8000, scoped, tag = 'output window, operand 0']
    #allocation3 [shape = 's32[2]{0}', space=sflag, size = 0x8, scoped, tag = 'scoped memory for tpu_custom_call.1']
    %14 = vsyncpa [#allocation3], 0
    %s15 = scalar_lea.sflag [#allocation3], 1
    %16 = vsyncpa %s15, 0
    loop: start=0, step=1, limit=4
    $region2: #{tpu_custom_call.1} parent=1 // loop_pre_header
      _
    $region3: #{tpu_custom_call.1} parent=1 // loop_header
      %s18 = sphi 0, %s22
      %p19 = scmp.ge.s32.totalorder %s18, 4
      %s28 = sphi 0, %s30
      %s31 = sphi 0, %s28
      %s32 = sphi 0, %s31
      %s48 = sphi 0, %s32
      %s52 = sphi 0, %s52
      %s54 = sphi 0, %s52
      %s55 = sphi 0, %s54
      %s69 = sphi 0, %s55
      %s73 = sphi 0, %s73
      %s75 = sphi 0, %s73
      %s76 = sphi 0, %s75
      %s90 = sphi 0, %s76
      %s94 = sphi 0, %s94
      %s96 = sphi 0, %s94
      %s97 = sphi 0, %s96
      %s111 = sphi 0, %s97
      %s115 = sphi 0, %s115
      %s117 = sphi 0, %s115
      %s118 = sphi 0, %s117
      %s132 = sphi 0, %s118
      %s136 = sphi 0, %s136
      %s138 = sphi 0, %s136
      %s139 = sphi 0, %s138
      %s153 = sphi 0, %s139
      %s157 = sphi 0, %s157
      %s159 = sphi 0, %s157
      %s160 = sphi 0, %s159
      %s174 = sphi 0, %s160
      %s178 = sphi 0, %s178
      %s180 = sphi 0, %s178
      %s181 = sphi 0, %s180
      %s195 = sphi 0, %s181
      %s199 = sphi 0, %s199
      %s201 = sphi 0, %s199
      %s202 = sphi 0, %s201
      %s216 = sphi 0, %s202
      %s222 = sphi 0, %s224
      %s225 = sphi 0, %s222
      %s226 = sphi 0, %s225
      %s242 = sphi 0, %s226
    $region4: #{tpu_custom_call.1} parent=1 // loop_header_branch
      %21 = sbr.rel (%p19) target = $region8
    $region5: #{tpu_custom_call.1} parent=1 // loop_body
      %s23 = ssub.s32 %s18, 1
      %s24 = ssub.s32 %s18, 2
      %s25 = sadd.s32 %s18, 1
      %s26 = ssub.s32 %s18, %s25
      %p27 = scmp.eq.s32.totalorder %s26, 0
      %s29 = sadd.s32 %s28, 1
      %s30 = scalar_select %p27, %s28, %s29
      %p33 = pneg %p27
      %p34 = scmp.eq.s32.totalorder %s18, 1
      %p35 = por %p33, %p34
      %p36 = scmp.ne.s32.totalorder %s28, %s31
      %p37 = scmp.eq.s32.totalorder %s18, 0
      %p38 = por %p36, %p37
      %p39 = scmp.ne.s32.totalorder %s28, %s31
      %p40 = scmp.eq.s32.totalorder %s23, 1
      %p41 = por %p39, %p40
      %p42 = scmp.ne.s32.totalorder %s31, %s32
      %p43 = scmp.eq.s32.totalorder %s23, 0
      %p44 = por %p42, %p43
      %p45 = scmp.ne.s32.totalorder %s31, %s32
      %p46 = scmp.eq.s32.totalorder %s24, 1
      %p47 = por %p45, %p46
      %p49 = scmp.ne.s32.totalorder %s32, %s48
      %p50 = scmp.eq.s32.totalorder %s24, 0
      %p51 = por %p49, %p50
      %s53 = sadd.s32 %s52, 1
      %p56 = scmp.eq.s32.totalorder %s18, 1
      %p57 = scmp.ne.s32.totalorder %s52, %s54
      %p58 = scmp.eq.s32.totalorder %s18, 0
      %p59 = por %p57, %p58
      %p60 = scmp.ne.s32.totalorder %s52, %s54
      %p61 = scmp.eq.s32.totalorder %s23, 1
      %p62 = por %p60, %p61
      %p63 = scmp.ne.s32.totalorder %s54, %s55
      %p64 = scmp.eq.s32.totalorder %s23, 0
      %p65 = por %p63, %p64
      %p66 = scmp.ne.s32.totalorder %s54, %s55
      %p67 = scmp.eq.s32.totalorder %s24, 1
      %p68 = por %p66, %p67
      %p70 = scmp.ne.s32.totalorder %s55, %s69
      %p71 = scmp.eq.s32.totalorder %s24, 0
      %p72 = por %p70, %p71
      %s74 = sadd.s32 %s73, 1
      %p77 = scmp.eq.s32.totalorder %s18, 1
      %p78 = scmp.ne.s32.totalorder %s73, %s75
      %p79 = scmp.eq.s32.totalorder %s18, 0
      %p80 = por %p78, %p79
      %p81 = scmp.ne.s32.totalorder %s73, %s75
      %p82 = scmp.eq.s32.totalorder %s23, 1
      %p83 = por %p81, %p82
      %p84 = scmp.ne.s32.totalorder %s75, %s76
      %p85 = scmp.eq.s32.totalorder %s23, 0
      %p86 = por %p84, %p85
      %p87 = scmp.ne.s32.totalorder %s75, %s76
      %p88 = scmp.eq.s32.totalorder %s24, 1
      %p89 = por %p87, %p88
      %p91 = scmp.ne.s32.totalorder %s76, %s90
      %p92 = scmp.eq.s32.totalorder %s24, 0
      %p93 = por %p91, %p92
      %s95 = sadd.s32 %s94, 1
      %p98 = scmp.eq.s32.totalorder %s18, 1
      %p99 = scmp.ne.s32.totalorder %s94, %s96
      %p100 = scmp.eq.s32.totalorder %s18, 0
      %p101 = por %p99, %p100
      %p102 = scmp.ne.s32.totalorder %s94, %s96
      %p103 = scmp.eq.s32.totalorder %s23, 1
      %p104 = por %p102, %p103
      %p105 = scmp.ne.s32.totalorder %s96, %s97
      %p106 = scmp.eq.s32.totalorder %s23, 0
      %p107 = por %p105, %p106
      %p108 = scmp.ne.s32.totalorder %s96, %s97
      %p109 = scmp.eq.s32.totalorder %s24, 1
      %p110 = por %p108, %p109
      %p112 = scmp.ne.s32.totalorder %s97, %s111
      %p113 = scmp.eq.s32.totalorder %s24, 0
      %p114 = por %p112, %p113
      %s116 = sadd.s32 %s115, 1
      %p119 = scmp.eq.s32.totalorder %s18, 1
      %p120 = scmp.ne.s32.totalorder %s115, %s117
      %p121 = scmp.eq.s32.totalorder %s18, 0
      %p122 = por %p120, %p121
      %p123 = scmp.ne.s32.totalorder %s115, %s117
      %p124 = scmp.eq.s32.totalorder %s23, 1
      %p125 = por %p123, %p124
      %p126 = scmp.ne.s32.totalorder %s117, %s118
      %p127 = scmp.eq.s32.totalorder %s23, 0
      %p128 = por %p126, %p127
      %p129 = scmp.ne.s32.totalorder %s117, %s118
      %p130 = scmp.eq.s32.totalorder %s24, 1
      %p131 = por %p129, %p130
      %p133 = scmp.ne.s32.totalorder %s118, %s132
      %p134 = scmp.eq.s32.totalorder %s24, 0
      %p135 = por %p133, %p134
      %s137 = sadd.s32 %s136, 1
      %p140 = scmp.eq.s32.totalorder %s18, 1
      %p141 = scmp.ne.s32.totalorder %s136, %s138
      %p142 = scmp.eq.s32.totalorder %s18, 0
      %p143 = por %p141, %p142
      %p144 = scmp.ne.s32.totalorder %s136, %s138
      %p145 = scmp.eq.s32.totalorder %s23, 1
      %p146 = por %p144, %p145
      %p147 = scmp.ne.s32.totalorder %s138, %s139
      %p148 = scmp.eq.s32.totalorder %s23, 0
      %p149 = por %p147, %p148
      %p150 = scmp.ne.s32.totalorder %s138, %s139
      %p151 = scmp.eq.s32.totalorder %s24, 1
      %p152 = por %p150, %p151
      %p154 = scmp.ne.s32.totalorder %s139, %s153
      %p155 = scmp.eq.s32.totalorder %s24, 0
      %p156 = por %p154, %p155
      %s158 = sadd.s32 %s157, 1
      %p161 = scmp.eq.s32.totalorder %s18, 1
      %p162 = scmp.ne.s32.totalorder %s157, %s159
      %p163 = scmp.eq.s32.totalorder %s18, 0
      %p164 = por %p162, %p163
      %p165 = scmp.ne.s32.totalorder %s157, %s159
      %p166 = scmp.eq.s32.totalorder %s23, 1
      %p167 = por %p165, %p166
      %p168 = scmp.ne.s32.totalorder %s159, %s160
      %p169 = scmp.eq.s32.totalorder %s23, 0
      %p170 = por %p168, %p169
      %p171 = scmp.ne.s32.totalorder %s159, %s160
      %p172 = scmp.eq.s32.totalorder %s24, 1
      %p173 = por %p171, %p172
      %p175 = scmp.ne.s32.totalorder %s160, %s174
      %p176 = scmp.eq.s32.totalorder %s24, 0
      %p177 = por %p175, %p176
      %s179 = sadd.s32 %s178, 1
      %p182 = scmp.eq.s32.totalorder %s18, 1
      %p183 = scmp.ne.s32.totalorder %s178, %s180
      %p184 = scmp.eq.s32.totalorder %s18, 0
      %p185 = por %p183, %p184
      %p186 = scmp.ne.s32.totalorder %s178, %s180
      %p187 = scmp.eq.s32.totalorder %s23, 1
      %p188 = por %p186, %p187
      %p189 = scmp.ne.s32.totalorder %s180, %s181
      %p190 = scmp.eq.s32.totalorder %s23, 0
      %p191 = por %p189, %p190
      %p192 = scmp.ne.s32.totalorder %s180, %s181
      %p193 = scmp.eq.s32.totalorder %s24, 1
      %p194 = por %p192, %p193
      %p196 = scmp.ne.s32.totalorder %s181, %s195
      %p197 = scmp.eq.s32.totalorder %s24, 0
      %p198 = por %p196, %p197
      %s200 = sadd.s32 %s199, 1
      %p203 = scmp.eq.s32.totalorder %s18, 1
      %p204 = scmp.ne.s32.totalorder %s199, %s201
      %p205 = scmp.eq.s32.totalorder %s18, 0
      %p206 = por %p204, %p205
      %p207 = scmp.ne.s32.totalorder %s199, %s201
      %p208 = scmp.eq.s32.totalorder %s23, 1
      %p209 = por %p207, %p208
      %p210 = scmp.ne.s32.totalorder %s201, %s202
      %p211 = scmp.eq.s32.totalorder %s23, 0
      %p212 = por %p210, %p211
      %p213 = scmp.ne.s32.totalorder %s201, %s202
      %p214 = scmp.eq.s32.totalorder %s24, 1
      %p215 = por %p213, %p214
      %p217 = scmp.ne.s32.totalorder %s202, %s216
      %p218 = scmp.eq.s32.totalorder %s24, 0
      %p219 = por %p217, %p218
      %s220 = ssub.s32 %s18, %s25
      %p221 = scmp.eq.s32.totalorder %s220, 0
      %s223 = sadd.s32 %s222, 1
      %s224 = scalar_select %p221, %s222, %s223
      %p227 = pneg %p221
      %p228 = scmp.eq.s32.totalorder %s18, 1
      %p229 = por %p227, %p228
      %p230 = scmp.ne.s32.totalorder %s222, %s225
      %p231 = scmp.eq.s32.totalorder %s18, 0
      %p232 = por %p230, %p231
      %p233 = scmp.ne.s32.totalorder %s222, %s225
      %p234 = scmp.eq.s32.totalorder %s23, 1
      %p235 = por %p233, %p234
      %p236 = scmp.ne.s32.totalorder %s225, %s226
      %p237 = scmp.eq.s32.totalorder %s23, 0
      %p238 = por %p236, %p237
      %p239 = scmp.ne.s32.totalorder %s225, %s226
      %p240 = scmp.eq.s32.totalorder %s24, 1
      %p241 = por %p239, %p240
      %p243 = scmp.ne.s32.totalorder %s226, %s242
      %p244 = scmp.eq.s32.totalorder %s24, 0
      %p245 = por %p243, %p244
      %p246 = scmp.le.s32.totalorder 1, %s18
      %p247 = scmp.lt.s32.totalorder %s18, 3
      %p248 = pnand %p246, %p247
      %p249 = pneg %p248
      // Predicated region
      $region9: #{tpu_custom_call.1} parent=5 // pred_check
        _
      $region10: #{tpu_custom_call.1} parent=5 // pred_check_branch
        %251 = sbr.rel (%p248) target = $region12
      $region11: #{tpu_custom_call.1} parent=5 // pred_region
        %s252 = ssub.s32 %s18, 1
        // Predicated region
        $region13: #{tpu_custom_call.1} parent=11 // pred_check
          %p253 = pneg %p65
        $region14: #{tpu_custom_call.1} parent=11 // pred_check_branch
          %255 = sbr.rel (%p253) target = $region16
        $region15: #{tpu_custom_call.1} parent=11 // pred_region
          _
        $region16: #{tpu_custom_call.1} parent=11 // pred_fallthru
          _
        // Predicated region
        $region17: #{tpu_custom_call.1} parent=11 // pred_check
          %p256 = pneg %p86
        $region18: #{tpu_custom_call.1} parent=11 // pred_check_branch
          %258 = sbr.rel (%p256) target = $region20
        $region19: #{tpu_custom_call.1} parent=11 // pred_region
          _
        $region20: #{tpu_custom_call.1} parent=11 // pred_fallthru
          _
        // Predicated region
        $region21: #{tpu_custom_call.1} parent=11 // pred_check
          %p259 = pneg %p107
        $region22: #{tpu_custom_call.1} parent=11 // pred_check_branch
          %261 = sbr.rel (%p259) target = $region24
        $region23: #{tpu_custom_call.1} parent=11 // pred_region
          _
        $region24: #{tpu_custom_call.1} parent=11 // pred_fallthru
          _
        // Predicated region
        $region25: #{tpu_custom_call.1} parent=11 // pred_check
          %p262 = pneg %p128
        $region26: #{tpu_custom_call.1} parent=11 // pred_check_branch
          %264 = sbr.rel (%p262) target = $region28
        $region27: #{tpu_custom_call.1} parent=11 // pred_region
          _
        $region28: #{tpu_custom_call.1} parent=11 // pred_fallthru
          _
        // Predicated region
        $region29: #{tpu_custom_call.1} parent=11 // pred_check
          %p265 = pneg %p149
        $region30: #{tpu_custom_call.1} parent=11 // pred_check_branch
          %267 = sbr.rel (%p265) target = $region32
        $region31: #{tpu_custom_call.1} parent=11 // pred_region
          _
        $region32: #{tpu_custom_call.1} parent=11 // pred_fallthru
          _
        // Predicated region
        $region33: #{tpu_custom_call.1} parent=11 // pred_check
          %p268 = pneg %p170
        $region34: #{tpu_custom_call.1} parent=11 // pred_check_branch
          %270 = sbr.rel (%p268) target = $region36
        $region35: #{tpu_custom_call.1} parent=11 // pred_region
          _
        $region36: #{tpu_custom_call.1} parent=11 // pred_fallthru
          _
        // Predicated region
        $region37: #{tpu_custom_call.1} parent=11 // pred_check
          %p271 = pneg %p191
        $region38: #{tpu_custom_call.1} parent=11 // pred_check_branch
          %273 = sbr.rel (%p271) target = $region40
        $region39: #{tpu_custom_call.1} parent=11 // pred_region
          _
        $region40: #{tpu_custom_call.1} parent=11 // pred_fallthru
          _
        // Predicated region
        $region41: #{tpu_custom_call.1} parent=11 // pred_check
          %p274 = pneg %p212
        $region42: #{tpu_custom_call.1} parent=11 // pred_check_branch
          %276 = sbr.rel (%p274) target = $region44
        $region43: #{tpu_custom_call.1} parent=11 // pred_region
          _
        $region44: #{tpu_custom_call.1} parent=11 // pred_fallthru
          _
      $region12: #{tpu_custom_call.1} parent=5 // pred_fallthru
        _
      %p277 = scmp.lt.s32.totalorder %s18, 2
      // Predicated region
      $region45: #{tpu_custom_call.1} parent=5 // pred_check
        %p278 = pneg %p277
      $region46: #{tpu_custom_call.1} parent=5 // pred_check_branch
        %280 = sbr.rel (%p278) target = $region48
      $region47: #{tpu_custom_call.1} parent=5 // pred_region
        // Predicated region
        $region49: #{tpu_custom_call.1} parent=47 // pred_check
          %p281 = pneg %p38
        $region50: #{tpu_custom_call.1} parent=47 // pred_check_branch
          %283 = sbr.rel (%p281) target = $region52
        $region51: #{tpu_custom_call.1} parent=47 // pred_region
          %p284 = scmp.lt.s32.totalorder %s18, 1
          %s285 = scalar_select %p284, %s18, 1
          %s286 = smul.addr %s285, 2
          %s287 = smul.addr %s286, 4
          %s288 = scalar_lea.vmem %s0, %s287
        $region52: #{tpu_custom_call.1} parent=47 // pred_fallthru
          _
      $region48: #{tpu_custom_call.1} parent=5 // pred_fallthru
        _
      %p289 = scmp.le.s32.totalorder 1, %s18
      %p290 = scmp.lt.s32.totalorder %s18, 3
      %p291 = pnand %p289, %p290
      %p292 = pneg %p291
      // Predicated region
      $region53: #{tpu_custom_call.1} parent=5 // pred_check
        _
      $region54: #{tpu_custom_call.1} parent=5 // pred_check_branch
        %294 = sbr.rel (%p291) target = $region56
      $region55: #{tpu_custom_call.1} parent=5 // pred_region
        %s295 = ssub.s32 %s18, 1
        %p296 = scmp.lt.s32.totalorder %s23, 1
        %s297 = scalar_select %p296, %s23, 1
        %s298 = smul.addr %s297, 2
        %s299 = smul.addr %s298, 4
        %s300 = scalar_lea.vmem %s0, %s299
        %p301 = pneg %p44
        %p302 = pneg %p41
        %p303 = pneg %p65
        %p304 = pneg %p62
        %p305 = pneg %p86
        %p306 = pneg %p83
        %p307 = pneg %p107
        %p308 = pneg %p104
        %p309 = pneg %p128
        %p310 = pneg %p125
        %p311 = pneg %p149
        %p312 = pneg %p146
        %p313 = pneg %p170
        %p314 = pneg %p167
        %p315 = pneg %p191
        %p316 = pneg %p188
        %p317 = pneg %p212
        %p318 = pneg %p209
        %p319 = pneg %p238
        %p320 = pneg %p235
        %s321 = sand.u32 %s225, 1
        %s322 = scalar_lea.sflag [#allocation3], %s321
        %s323 = sand.u32 %s225, 1
        %s324 = smul.addr %s323, 32
        %s325 = scalar_lea.vmem [#allocation2], %s324
        %p326 = scmp.lt.s32.totalorder %s23, 1
        %s327 = scalar_select %p326, %s23, 1
        %s328 = smul.addr %s327, 2
        %s329 = smul.addr %s328, 4
        %s330 = scalar_lea.vmem %s0, %s329
        %v332 = vld [vmem:[%s330] sm:$0xff]
        %v334 = vcombine.high %v332, %v332
        %v336 = vpack.c.bf16 %v332, %v332
        %v337 = vpack.c.bf16 %v334, %v334
        %v338 = vld [vmem:[%s1] sm:$0xf]
        %v339 = vld [vmem:[%s1 + $0x4] sm:$0xf]
        %v340 = vld [vmem:[%s1 + $0x8] sm:$0x3]
        %v344 = vunpack.c.l.b16 %v338
        %v345 = vunpack.c.l.b16 %v339
        %v346 = vunpack.c.l.b16 %v340
        %v347 = vpack.c.b16 %v345, %v344
        %v348 = vpack.c.b16 %v346, %v346
        %vm349 = vcmask 31744
        %v351 = vsel %vm349, %v347, 0
        %v354 = vsel %vm349, %v348, 0
        %vm356 = vcmask 1041408
        %v358 = vsel %vm356, %v336, 0
        %v361 = vsel %vm356, %v337, 0
        %363 = vmatprep.subr.bf16.mxu0 0
        %364 = vmatpush1.bf16.msra.mxu0 0
        %365 = vmatprep.subr.bf16.mxu0 0
        %366 = vmatpush1.bf16.msra.mxu0 0
        %367 = vmatprep.subr.bf16.mxu0 0
        %368 = vmatpush1.bf16.msra.mxu0 0
        %369 = vmatprep.subr.bf16.mxu0 0
        %370 = vmatpush1.bf16.msra.mxu0 0
        %371 = vmatprep.subr.bf16.mxu0 0
        %372 = vmatpush1.bf16.msra.mxu0 0
        %373 = vmatprep.subr.bf16.mxu0 0
        %374 = vmatpush1.bf16.msra.mxu0 0
        %375 = vmatprep.subr.bf16.mxu0 0
        %376 = vmatpush1.bf16.msra.mxu0 0
        %377 = vmatprep.subr.bf16.mxu0 %v361
        %378 = vmatpush1.bf16.msra.mxu0 %v358
        %379 = vmatprep.subr.bf16.mxu0 0
        %380 = vmatpush2.bf16.msra.mxu0 0
        %381 = vmatprep.subr.bf16.mxu0 0
        %382 = vmatpush2.bf16.msra.mxu0 0
        %383 = vmatprep.subr.bf16.mxu0 0
        %384 = vmatpush2.bf16.msra.mxu0 0
        %385 = vmatprep.subr.bf16.mxu0 0
        %386 = vmatpush2.bf16.msra.mxu0 0
        %387 = vmatprep.subr.bf16.mxu0 0
        %388 = vmatpush2.bf16.msra.mxu0 0
        %389 = vmatprep.subr.bf16.mxu0 0
        %390 = vmatpush2.bf16.msra.mxu0 0
        %391 = vmatprep.subr.bf16.mxu0 0
        %392 = vmatpush2.bf16.msra.mxu0 0
        %393 = vmatprep.subr.bf16.mxu0 0
        %394 = vmatpush2.bf16.msra.mxu0 0
        %395 = vmatprep.mubr.bf16.mxu0 0
        %396 = vmatmul.mubr.bf16.gmra.mxu0 %v351
        %v397 = vpop.f32.mrf.mxu0
        %v398 = vadd.f32 0.0, %v397
        %v399 = vpop.f32.mrf.mxu0
        %v400 = vadd.f32 0.0, %v399
        %v401 = vpop.f32.mrf.mxu0
        %v402 = vadd.f32 0.0, %v401
        %v403 = vpop.f32.mrf.mxu0
        %v404 = vadd.f32 0.0, %v403
        %405 = vmatprep.mubr.bf16.mxu0 0
        %406 = vmatmul.mubr.bf16.gmra.mxu0 %v354
        %v407 = vpop.f32.mrf.mxu0
        %v408 = vadd.f32 0.0, %v407
        %v409 = vpop.f32.mrf.mxu0
        %v410 = vadd.f32 0.0, %v409
        %v411 = vpop.f32.mrf.mxu0
        %v412 = vpop.f32.mrf.mxu0
        %413 = vdwg.mxu0
        %v414 = vld [vmem:[%s2] sm:$0xff]
        %v415 = vld [vmem:[%s2 + $0x8] sm:$0xff]
        %417 = vset.pattern.permute.xlu0 0
        %418 = vperm.xlu0 %417, %v414
        %v419 = vpop.permute.xlu0 %418
        %422 = vset.pattern.permute.xlu0 0
        %423 = vperm.xlu0 %422, %v415
        %v424 = vpop.permute.xlu0 %423
        %v426 = vadd.f32 %v398, %v419
        %v427 = vadd.f32 %v400, %v419
        %v428 = vadd.f32 %v402, %v424
        %v429 = vadd.f32 %v404, %v424
        %v430 = vld [vmem:[%s3] sm:$0xf]
        %432 = vset.pattern.permute.xlu0 0
        %433 = vperm.xlu0 %432, %v430
        %v434 = vpop.permute.xlu0 %433
        %v436 = vadd.f32 %v408, %v434
        %v437 = vadd.f32 %v410, %v434
        %v438 = vmax.f32 %v436, 0.0
        %v439 = vmax.f32 %v437, 0.0
        %v440 = vpack.c.bf16 %v438, %v438
        %v441 = vpack.c.bf16 %v439, %v439
        %v442 = vld [vmem:[%s4] sm:$0x3]
        %v444 = vsel %vm349, %v442, 0
        %v447 = vsel %vm356, %v440, 0
        %v450 = vsel %vm356, %v441, 0
        %452 = vmatprep.subr.bf16.mxu0 0
        %453 = vmatpush1.bf16.msra.mxu0 0
        %454 = vmatprep.subr.bf16.mxu0 0
        %455 = vmatpush1.bf16.msra.mxu0 0
        %456 = vmatprep.subr.bf16.mxu0 0
        %457 = vmatpush1.bf16.msra.mxu0 0
        %458 = vmatprep.subr.bf16.mxu0 0
        %459 = vmatpush1.bf16.msra.mxu0 0
        %460 = vmatprep.subr.bf16.mxu0 0
        %461 = vmatpush1.bf16.msra.mxu0 0
        %462 = vmatprep.subr.bf16.mxu0 0
        %463 = vmatpush1.bf16.msra.mxu0 0
        %464 = vmatprep.subr.bf16.mxu0 0
        %465 = vmatpush1.bf16.msra.mxu0 0
        %466 = vmatprep.subr.bf16.mxu0 %v450
        %467 = vmatpush1.bf16.msra.mxu0 %v447
        %468 = vmatprep.subr.bf16.mxu0 0
        %469 = vmatpush2.bf16.msra.mxu0 0
        %470 = vmatprep.subr.bf16.mxu0 0
        %471 = vmatpush2.bf16.msra.mxu0 0
        %472 = vmatprep.subr.bf16.mxu0 0
        %473 = vmatpush2.bf16.msra.mxu0 0
        %474 = vmatprep.subr.bf16.mxu0 0
        %475 = vmatpush2.bf16.msra.mxu0 0
        %476 = vmatprep.subr.bf16.mxu0 0
        %477 = vmatpush2.bf16.msra.mxu0 0
        %478 = vmatprep.subr.bf16.mxu0 0
        %479 = vmatpush2.bf16.msra.mxu0 0
        %480 = vmatprep.subr.bf16.mxu0 0
        %481 = vmatpush2.bf16.msra.mxu0 0
        %482 = vmatprep.subr.bf16.mxu0 0
        %483 = vmatpush2.bf16.msra.mxu0 0
        %484 = vmatprep.mubr.bf16.mxu0 0
        %485 = vmatmul.mubr.bf16.gmra.mxu0 %v444
        %v486 = vpop.f32.mrf.mxu0
        %v487 = vadd.f32 0.0, %v486
        %v488 = vpop.f32.mrf.mxu0
        %v489 = vadd.f32 0.0, %v488
        %v490 = vpop.f32.mrf.mxu0
        %v491 = vpop.f32.mrf.mxu0
        %492 = vdwg.mxu0
        %493 = vrot.lane.b32.xlu0 %v487, 17
        %v494 = vpop.permute.xlu0 %493
        %495 = vrot.lane.b32.xlu0 %v489, 17
        %v496 = vpop.permute.xlu0 %495
        %v497 = vlaneseq
        %v498 = vand.u32 %v497, 127
        %vm499 = vcmp.lt.s32.totalorder %v498, 17
        %v500 = vsel %vm499, %v494, %v496
        %v501 = vsel %vm499, %v496, %v494
        %v502 = vld [vmem:[%s5] ss:$8 sm:$0x3]
        %v504 = vlaneseq
        %v505 = vshrl.u32 %v504, 7
        %v506 = vsub.s32 0, %v505
        %v507 = vrot.slane %v502, %v506
        %v508 = vlaneseq
        %v509 = vshrl.u32 %v508, 7
        %v510 = vsub.s32 1, %v509
        %v511 = vrot.slane %v502, %v510
        %v514 = vmul.f32 %v501, %v507
        %v515 = vmul.f32 %v500, %v511
        %v516 = vadd.f32 %v514, 0.0
        %v517 = vadd.f32 %v515, 0.0
        %s518 = scalar_lea.vmem %s4, 2
        %v519 = vld [vmem:[%s518] sm:$0x3]
        %v521 = vsel %vm349, %v519, 0
        %523 = vmatprep.subr.bf16.mxu0 0
        %524 = vmatpush1.bf16.msra.mxu0 0
        %525 = vmatprep.subr.bf16.mxu0 0
        %526 = vmatpush1.bf16.msra.mxu0 0
        %527 = vmatprep.subr.bf16.mxu0 0
        %528 = vmatpush1.bf16.msra.mxu0 0
        %529 = vmatprep.subr.bf16.mxu0 0
        %530 = vmatpush1.bf16.msra.mxu0 0
        %531 = vmatprep.subr.bf16.mxu0 0
        %532 = vmatpush1.bf16.msra.mxu0 0
        %533 = vmatprep.subr.bf16.mxu0 0
        %534 = vmatpush1.bf16.msra.mxu0 0
        %535 = vmatprep.subr.bf16.mxu0 0
        %536 = vmatpush1.bf16.msra.mxu0 0
        %537 = vmatprep.subr.bf16.mxu0 %v450
        %538 = vmatpush1.bf16.msra.mxu0 %v447
        %539 = vmatprep.subr.bf16.mxu0 0
        %540 = vmatpush2.bf16.msra.mxu0 0
        %541 = vmatprep.subr.bf16.mxu0 0
        %542 = vmatpush2.bf16.msra.mxu0 0
        %543 = vmatprep.subr.bf16.mxu0 0
        %544 = vmatpush2.bf16.msra.mxu0 0
        %545 = vmatprep.subr.bf16.mxu0 0
        %546 = vmatpush2.bf16.msra.mxu0 0
        %547 = vmatprep.subr.bf16.mxu0 0
        %548 = vmatpush2.bf16.msra.mxu0 0
        %549 = vmatprep.subr.bf16.mxu0 0
        %550 = vmatpush2.bf16.msra.mxu0 0
        %551 = vmatprep.subr.bf16.mxu0 0
        %552 = vmatpush2.bf16.msra.mxu0 0
        %553 = vmatprep.subr.bf16.mxu0 0
        %554 = vmatpush2.bf16.msra.mxu0 0
        %555 = vmatprep.mubr.bf16.mxu0 0
        %556 = vmatmul.mubr.bf16.gmra.mxu0 %v521
        %v557 = vpop.f32.mrf.mxu0
        %v558 = vadd.f32 0.0, %v557
        %v559 = vpop.f32.mrf.mxu0
        %v560 = vadd.f32 0.0, %v559
        %v561 = vpop.f32.mrf.mxu0
        %v562 = vpop.f32.mrf.mxu0
        %563 = vdwg.mxu0
        %564 = vrot.lane.b32.xlu0 %v558, 16
        %v565 = vpop.permute.xlu0 %564
        %566 = vrot.lane.b32.xlu0 %v560, 16
        %v567 = vpop.permute.xlu0 %566
        %vm568 = vcmp.lt.s32.totalorder %v498, 16
        %v569 = vsel %vm568, %v565, %v567
        %v570 = vsel %vm568, %v567, %v565
        %s571 = scalar_lea.vmem %s5, 1
        %v572 = vld [vmem:[%s571] ss:$8 sm:$0x3]
        %v574 = vlaneseq
        %v575 = vshrl.u32 %v574, 7
        %v576 = vsub.s32 0, %v575
        %v577 = vrot.slane %v572, %v576
        %v578 = vlaneseq
        %v579 = vshrl.u32 %v578, 7
        %v580 = vsub.s32 1, %v579
        %v581 = vrot.slane %v572, %v580
        %v584 = vmul.f32 %v570, %v577
        %v585 = vmul.f32 %v569, %v581
        %v586 = vadd.f32 %v516, %v584
        %v587 = vadd.f32 %v517, %v585
        %s588 = scalar_lea.vmem %s4, 4
        %v589 = vld [vmem:[%s588] sm:$0x3]
        %v591 = vsel %vm349, %v589, 0
        %593 = vmatprep.subr.bf16.mxu0 0
        %594 = vmatpush1.bf16.msra.mxu0 0
        %595 = vmatprep.subr.bf16.mxu0 0
        %596 = vmatpush1.bf16.msra.mxu0 0
        %597 = vmatprep.subr.bf16.mxu0 0
        %598 = vmatpush1.bf16.msra.mxu0 0
        %599 = vmatprep.subr.bf16.mxu0 0
        %600 = vmatpush1.bf16.msra.mxu0 0
        %601 = vmatprep.subr.bf16.mxu0 0
        %602 = vmatpush1.bf16.msra.mxu0 0
        %603 = vmatprep.subr.bf16.mxu0 0
        %604 = vmatpush1.bf16.msra.mxu0 0
        %605 = vmatprep.subr.bf16.mxu0 0
        %606 = vmatpush1.bf16.msra.mxu0 0
        %607 = vmatprep.subr.bf16.mxu0 %v450
        %608 = vmatpush1.bf16.msra.mxu0 %v447
        %609 = vmatprep.subr.bf16.mxu0 0
        %610 = vmatpush2.bf16.msra.mxu0 0
        %611 = vmatprep.subr.bf16.mxu0 0
        %612 = vmatpush2.bf16.msra.mxu0 0
        %613 = vmatprep.subr.bf16.mxu0 0
        %614 = vmatpush2.bf16.msra.mxu0 0
        %615 = vmatprep.subr.bf16.mxu0 0
        %616 = vmatpush2.bf16.msra.mxu0 0
        %617 = vmatprep.subr.bf16.mxu0 0
        %618 = vmatpush2.bf16.msra.mxu0 0
        %619 = vmatprep.subr.bf16.mxu0 0
        %620 = vmatpush2.bf16.msra.mxu0 0
        %621 = vmatprep.subr.bf16.mxu0 0
        %622 = vmatpush2.bf16.msra.mxu0 0
        %623 = vmatprep.subr.bf16.mxu0 0
        %624 = vmatpush2.bf16.msra.mxu0 0
        %625 = vmatprep.mubr.bf16.mxu0 0
        %626 = vmatmul.mubr.bf16.gmra.mxu0 %v591
        %v627 = vpop.f32.mrf.mxu0
        %v628 = vadd.f32 0.0, %v627
        %v629 = vpop.f32.mrf.mxu0
        %v630 = vadd.f32 0.0, %v629
        %v631 = vpop.f32.mrf.mxu0
        %v632 = vpop.f32.mrf.mxu0
        %633 = vdwg.mxu0
        %634 = vrot.lane.b32.xlu0 %v628, 15
        %v635 = vpop.permute.xlu0 %634
        %636 = vrot.lane.b32.xlu0 %v630, 15
        %v637 = vpop.permute.xlu0 %636
        %vm638 = vcmp.lt.s32.totalorder %v498, 15
        %v639 = vsel %vm638, %v635, %v637
        %v640 = vsel %vm638, %v637, %v635
        %s641 = scalar_lea.vmem %s5, 2
        %v642 = vld [vmem:[%s641] ss:$8 sm:$0x3]
        %v644 = vlaneseq
        %v645 = vshrl.u32 %v644, 7
        %v646 = vsub.s32 0, %v645
        %v647 = vrot.slane %v642, %v646
        %v648 = vlaneseq
        %v649 = vshrl.u32 %v648, 7
        %v650 = vsub.s32 1, %v649
        %v651 = vrot.slane %v642, %v650
        %v654 = vmul.f32 %v640, %v647
        %v655 = vmul.f32 %v639, %v651
        %v656 = vadd.f32 %v586, %v654
        %v657 = vadd.f32 %v587, %v655
        %s658 = scalar_lea.vmem %s4, 6
        %v659 = vld [vmem:[%s658] sm:$0x3]
        %v661 = vsel %vm349, %v659, 0
        %663 = vmatprep.subr.bf16.mxu0 0
        %664 = vmatpush1.bf16.msra.mxu0 0
        %665 = vmatprep.subr.bf16.mxu0 0
        %666 = vmatpush1.bf16.msra.mxu0 0
        %667 = vmatprep.subr.bf16.mxu0 0
        %668 = vmatpush1.bf16.msra.mxu0 0
        %669 = vmatprep.subr.bf16.mxu0 0
        %670 = vmatpush1.bf16.msra.mxu0 0
        %671 = vmatprep.subr.bf16.mxu0 0
        %672 = vmatpush1.bf16.msra.mxu0 0
        %673 = vmatprep.subr.bf16.mxu0 0
        %674 = vmatpush1.bf16.msra.mxu0 0
        %675 = vmatprep.subr.bf16.mxu0 0
        %676 = vmatpush1.bf16.msra.mxu0 0
        %677 = vmatprep.subr.bf16.mxu0 %v450
        %678 = vmatpush1.bf16.msra.mxu0 %v447
        %679 = vmatprep.subr.bf16.mxu0 0
        %680 = vmatpush2.bf16.msra.mxu0 0
        %681 = vmatprep.subr.bf16.mxu0 0
        %682 = vmatpush2.bf16.msra.mxu0 0
        %683 = vmatprep.subr.bf16.mxu0 0
        %684 = vmatpush2.bf16.msra.mxu0 0
        %685 = vmatprep.subr.bf16.mxu0 0
        %686 = vmatpush2.bf16.msra.mxu0 0
        %687 = vmatprep.subr.bf16.mxu0 0
        %688 = vmatpush2.bf16.msra.mxu0 0
        %689 = vmatprep.subr.bf16.mxu0 0
        %690 = vmatpush2.bf16.msra.mxu0 0
        %691 = vmatprep.subr.bf16.mxu0 0
        %692 = vmatpush2.bf16.msra.mxu0 0
        %693 = vmatprep.subr.bf16.mxu0 0
        %694 = vmatpush2.bf16.msra.mxu0 0
        %695 = vmatprep.mubr.bf16.mxu0 0
        %696 = vmatmul.mubr.bf16.gmra.mxu0 %v661
        %v697 = vpop.f32.mrf.mxu0
        %v698 = vadd.f32 0.0, %v697
        %v699 = vpop.f32.mrf.mxu0
        %v700 = vadd.f32 0.0, %v699
        %v701 = vpop.f32.mrf.mxu0
        %v702 = vpop.f32.mrf.mxu0
        %703 = vdwg.mxu0
        %704 = vrot.lane.b32.xlu0 %v698, 1
        %v705 = vpop.permute.xlu0 %704
        %706 = vrot.lane.b32.xlu0 %v700, 1
        %v707 = vpop.permute.xlu0 %706
        %vm708 = vcmp.lt.s32.totalorder %v498, 1
        %v709 = vsel %vm708, %v705, %v707
        %v710 = vsel %vm708, %v707, %v705
        %s711 = scalar_lea.vmem %s5, 3
        %v712 = vld [vmem:[%s711] ss:$8 sm:$0x3]
        %v714 = vlaneseq
        %v715 = vshrl.u32 %v714, 7
        %v716 = vsub.s32 0, %v715
        %v717 = vrot.slane %v712, %v716
        %v718 = vlaneseq
        %v719 = vshrl.u32 %v718, 7
        %v720 = vsub.s32 1, %v719
        %v721 = vrot.slane %v712, %v720
        %v724 = vmul.f32 %v710, %v717
        %v725 = vmul.f32 %v709, %v721
        %v726 = vadd.f32 %v656, %v724
        %v727 = vadd.f32 %v657, %v725
        %s728 = scalar_lea.vmem %s4, 8
        %v729 = vld [vmem:[%s728] sm:$0x3]
        %v731 = vsel %vm349, %v729, 0
        %733 = vmatprep.subr.bf16.mxu0 0
        %734 = vmatpush1.bf16.msra.mxu0 0
        %735 = vmatprep.subr.bf16.mxu0 0
        %736 = vmatpush1.bf16.msra.mxu0 0
        %737 = vmatprep.subr.bf16.mxu0 0
        %738 = vmatpush1.bf16.msra.mxu0 0
        %739 = vmatprep.subr.bf16.mxu0 0
        %740 = vmatpush1.bf16.msra.mxu0 0
        %741 = vmatprep.subr.bf16.mxu0 0
        %742 = vmatpush1.bf16.msra.mxu0 0
        %743 = vmatprep.subr.bf16.mxu0 0
        %744 = vmatpush1.bf16.msra.mxu0 0
        %745 = vmatprep.subr.bf16.mxu0 0
        %746 = vmatpush1.bf16.msra.mxu0 0
        %747 = vmatprep.subr.bf16.mxu0 %v450
        %748 = vmatpush1.bf16.msra.mxu0 %v447
        %749 = vmatprep.subr.bf16.mxu0 0
        %750 = vmatpush2.bf16.msra.mxu0 0
        %751 = vmatprep.subr.bf16.mxu0 0
        %752 = vmatpush2.bf16.msra.mxu0 0
        %753 = vmatprep.subr.bf16.mxu0 0
        %754 = vmatpush2.bf16.msra.mxu0 0
        %755 = vmatprep.subr.bf16.mxu0 0
        %756 = vmatpush2.bf16.msra.mxu0 0
        %757 = vmatprep.subr.bf16.mxu0 0
        %758 = vmatpush2.bf16.msra.mxu0 0
        %759 = vmatprep.subr.bf16.mxu0 0
        %760 = vmatpush2.bf16.msra.mxu0 0
        %761 = vmatprep.subr.bf16.mxu0 0
        %762 = vmatpush2.bf16.msra.mxu0 0
        %763 = vmatprep.subr.bf16.mxu0 0
        %764 = vmatpush2.bf16.msra.mxu0 0
        %765 = vmatprep.mubr.bf16.mxu0 0
        %766 = vmatmul.mubr.bf16.gmra.mxu0 %v731
        %v767 = vpop.f32.mrf.mxu0
        %v768 = vadd.f32 0.0, %v767
        %v769 = vpop.f32.mrf.mxu0
        %v770 = vadd.f32 0.0, %v769
        %v771 = vpop.f32.mrf.mxu0
        %v772 = vpop.f32.mrf.mxu0
        %773 = vdwg.mxu0
        %v774 = vadd.f32 %v726, %v768
        %v775 = vadd.f32 %v727, %v770
        %s776 = scalar_lea.vmem %s4, 10
        %v777 = vld [vmem:[%s776] sm:$0x3]
        %v779 = vsel %vm349, %v777, 0
        %781 = vmatprep.subr.bf16.mxu0 0
        %782 = vmatpush1.bf16.msra.mxu0 0
        %783 = vmatprep.subr.bf16.mxu0 0
        %784 = vmatpush1.bf16.msra.mxu0 0
        %785 = vmatprep.subr.bf16.mxu0 0
        %786 = vmatpush1.bf16.msra.mxu0 0
        %787 = vmatprep.subr.bf16.mxu0 0
        %788 = vmatpush1.bf16.msra.mxu0 0
        %789 = vmatprep.subr.bf16.mxu0 0
        %790 = vmatpush1.bf16.msra.mxu0 0
        %791 = vmatprep.subr.bf16.mxu0 0
        %792 = vmatpush1.bf16.msra.mxu0 0
        %793 = vmatprep.subr.bf16.mxu0 0
        %794 = vmatpush1.bf16.msra.mxu0 0
        %795 = vmatprep.subr.bf16.mxu0 %v450
        %796 = vmatpush1.bf16.msra.mxu0 %v447
        %797 = vmatprep.subr.bf16.mxu0 0
        %798 = vmatpush2.bf16.msra.mxu0 0
        %799 = vmatprep.subr.bf16.mxu0 0
        %800 = vmatpush2.bf16.msra.mxu0 0
        %801 = vmatprep.subr.bf16.mxu0 0
        %802 = vmatpush2.bf16.msra.mxu0 0
        %803 = vmatprep.subr.bf16.mxu0 0
        %804 = vmatpush2.bf16.msra.mxu0 0
        %805 = vmatprep.subr.bf16.mxu0 0
        %806 = vmatpush2.bf16.msra.mxu0 0
        %807 = vmatprep.subr.bf16.mxu0 0
        %808 = vmatpush2.bf16.msra.mxu0 0
        %809 = vmatprep.subr.bf16.mxu0 0
        %810 = vmatpush2.bf16.msra.mxu0 0
        %811 = vmatprep.subr.bf16.mxu0 0
        %812 = vmatpush2.bf16.msra.mxu0 0
        %813 = vmatprep.mubr.bf16.mxu0 0
        %814 = vmatmul.mubr.bf16.gmra.mxu0 %v779
        %v815 = vpop.f32.mrf.mxu0
        %v816 = vadd.f32 0.0, %v815
        %v817 = vpop.f32.mrf.mxu0
        %v818 = vadd.f32 0.0, %v817
        %v819 = vpop.f32.mrf.mxu0
        %v820 = vpop.f32.mrf.mxu0
        %821 = vdwg.mxu0
        %822 = vrot.lane.b32.xlu0 %v816, 127
        %v823 = vpop.permute.xlu0 %822
        %824 = vrot.lane.b32.xlu0 %v818, 127
        %v825 = vpop.permute.xlu0 %824
        %vm826 = vcmp.lt.s32.totalorder %v498, 127
        %v827 = vsel %vm826, %v823, %v825
        %v828 = vsel %vm826, %v825, %v823
        %s829 = scalar_lea.vmem %s5, 5
        %v830 = vld [vmem:[%s829] ss:$8 sm:$0x3]
        %v832 = vlaneseq
        %v833 = vshrl.u32 %v832, 7
        %v834 = vsub.s32 0, %v833
        %v835 = vrot.slane %v830, %v834
        %v836 = vlaneseq
        %v837 = vshrl.u32 %v836, 7
        %v838 = vsub.s32 1, %v837
        %v839 = vrot.slane %v830, %v838
        %v842 = vmul.f32 %v827, %v835
        %v843 = vmul.f32 %v828, %v839
        %v844 = vadd.f32 %v774, %v842
        %v845 = vadd.f32 %v775, %v843
        %s846 = scalar_lea.vmem %s4, 12
        %v847 = vld [vmem:[%s846] sm:$0x3]
        %v849 = vsel %vm349, %v847, 0
        %851 = vmatprep.subr.bf16.mxu0 0
        %852 = vmatpush1.bf16.msra.mxu0 0
        %853 = vmatprep.subr.bf16.mxu0 0
        %854 = vmatpush1.bf16.msra.mxu0 0
        %855 = vmatprep.subr.bf16.mxu0 0
        %856 = vmatpush1.bf16.msra.mxu0 0
        %857 = vmatprep.subr.bf16.mxu0 0
        %858 = vmatpush1.bf16.msra.mxu0 0
        %859 = vmatprep.subr.bf16.mxu0 0
        %860 = vmatpush1.bf16.msra.mxu0 0
        %861 = vmatprep.subr.bf16.mxu0 0
        %862 = vmatpush1.bf16.msra.mxu0 0
        %863 = vmatprep.subr.bf16.mxu0 0
        %864 = vmatpush1.bf16.msra.mxu0 0
        %865 = vmatprep.subr.bf16.mxu0 %v450
        %866 = vmatpush1.bf16.msra.mxu0 %v447
        %867 = vmatprep.subr.bf16.mxu0 0
        %868 = vmatpush2.bf16.msra.mxu0 0
        %869 = vmatprep.subr.bf16.mxu0 0
        %870 = vmatpush2.bf16.msra.mxu0 0
        %871 = vmatprep.subr.bf16.mxu0 0
        %872 = vmatpush2.bf16.msra.mxu0 0
        %873 = vmatprep.subr.bf16.mxu0 0
        %874 = vmatpush2.bf16.msra.mxu0 0
        %875 = vmatprep.subr.bf16.mxu0 0
        %876 = vmatpush2.bf16.msra.mxu0 0
        %877 = vmatprep.subr.bf16.mxu0 0
        %878 = vmatpush2.bf16.msra.mxu0 0
        %879 = vmatprep.subr.bf16.mxu0 0
        %880 = vmatpush2.bf16.msra.mxu0 0
        %881 = vmatprep.subr.bf16.mxu0 0
        %882 = vmatpush2.bf16.msra.mxu0 0
        %883 = vmatprep.mubr.bf16.mxu0 0
        %884 = vmatmul.mubr.bf16.gmra.mxu0 %v849
        %v885 = vpop.f32.mrf.mxu0
        %v886 = vadd.f32 0.0, %v885
        %v887 = vpop.f32.mrf.mxu0
        %v888 = vadd.f32 0.0, %v887
        %v889 = vpop.f32.mrf.mxu0
        %v890 = vpop.f32.mrf.mxu0
        %891 = vdwg.mxu0
        %892 = vrot.lane.b32.xlu0 %v886, 113
        %v893 = vpop.permute.xlu0 %892
        %894 = vrot.lane.b32.xlu0 %v888, 113
        %v895 = vpop.permute.xlu0 %894
        %vm896 = vcmp.lt.s32.totalorder %v498, 113
        %v897 = vsel %vm896, %v893, %v895
        %v898 = vsel %vm896, %v895, %v893
        %s899 = scalar_lea.vmem %s5, 6
        %v900 = vld [vmem:[%s899] ss:$8 sm:$0x3]
        %v902 = vlaneseq
        %v903 = vshrl.u32 %v902, 7
        %v904 = vsub.s32 0, %v903
        %v905 = vrot.slane %v900, %v904
        %v906 = vlaneseq
        %v907 = vshrl.u32 %v906, 7
        %v908 = vsub.s32 1, %v907
        %v909 = vrot.slane %v900, %v908
        %v912 = vmul.f32 %v897, %v905
        %v913 = vmul.f32 %v898, %v909
        %v914 = vadd.f32 %v844, %v912
        %v915 = vadd.f32 %v845, %v913
        %s916 = scalar_lea.vmem %s4, 14
        %v917 = vld [vmem:[%s916] sm:$0x3]
        %v919 = vsel %vm349, %v917, 0
        %921 = vmatprep.subr.bf16.mxu0 0
        %922 = vmatpush1.bf16.msra.mxu0 0
        %923 = vmatprep.subr.bf16.mxu0 0
        %924 = vmatpush1.bf16.msra.mxu0 0
        %925 = vmatprep.subr.bf16.mxu0 0
        %926 = vmatpush1.bf16.msra.mxu0 0
        %927 = vmatprep.subr.bf16.mxu0 0
        %928 = vmatpush1.bf16.msra.mxu0 0
        %929 = vmatprep.subr.bf16.mxu0 0
        %930 = vmatpush1.bf16.msra.mxu0 0
        %931 = vmatprep.subr.bf16.mxu0 0
        %932 = vmatpush1.bf16.msra.mxu0 0
        %933 = vmatprep.subr.bf16.mxu0 0
        %934 = vmatpush1.bf16.msra.mxu0 0
        %935 = vmatprep.subr.bf16.mxu0 %v450
        %936 = vmatpush1.bf16.msra.mxu0 %v447
        %937 = vmatprep.subr.bf16.mxu0 0
        %938 = vmatpush2.bf16.msra.mxu0 0
        %939 = vmatprep.subr.bf16.mxu0 0
        %940 = vmatpush2.bf16.msra.mxu0 0
        %941 = vmatprep.subr.bf16.mxu0 0
        %942 = vmatpush2.bf16.msra.mxu0 0
        %943 = vmatprep.subr.bf16.mxu0 0
        %944 = vmatpush2.bf16.msra.mxu0 0
        %945 = vmatprep.subr.bf16.mxu0 0
        %946 = vmatpush2.bf16.msra.mxu0 0
        %947 = vmatprep.subr.bf16.mxu0 0
        %948 = vmatpush2.bf16.msra.mxu0 0
        %949 = vmatprep.subr.bf16.mxu0 0
        %950 = vmatpush2.bf16.msra.mxu0 0
        %951 = vmatprep.subr.bf16.mxu0 0
        %952 = vmatpush2.bf16.msra.mxu0 0
        %953 = vmatprep.mubr.bf16.mxu0 0
        %954 = vmatmul.mubr.bf16.gmra.mxu0 %v919
        %v955 = vpop.f32.mrf.mxu0
        %v956 = vadd.f32 0.0, %v955
        %v957 = vpop.f32.mrf.mxu0
        %v958 = vadd.f32 0.0, %v957
        %v959 = vpop.f32.mrf.mxu0
        %v960 = vpop.f32.mrf.mxu0
        %961 = vdwg.mxu0
        %962 = vrot.lane.b32.xlu0 %v956, 112
        %v963 = vpop.permute.xlu0 %962
        %964 = vrot.lane.b32.xlu0 %v958, 112
        %v965 = vpop.permute.xlu0 %964
        %vm966 = vcmp.lt.s32.totalorder %v498, 112
        %v967 = vsel %vm966, %v963, %v965
        %v968 = vsel %vm966, %v965, %v963
        %s969 = scalar_lea.vmem %s5, 7
        %v970 = vld [vmem:[%s969] ss:$8 sm:$0x3]
        %v972 = vlaneseq
        %v973 = vshrl.u32 %v972, 7
        %v974 = vsub.s32 0, %v973
        %v975 = vrot.slane %v970, %v974
        %v976 = vlaneseq
        %v977 = vshrl.u32 %v976, 7
        %v978 = vsub.s32 1, %v977
        %v979 = vrot.slane %v970, %v978
        %v982 = vmul.f32 %v967, %v975
        %v983 = vmul.f32 %v968, %v979
        %v984 = vadd.f32 %v914, %v982
        %v985 = vadd.f32 %v915, %v983
        %s986 = scalar_lea.vmem %s4, 16
        %v987 = vld [vmem:[%s986] sm:$0x3]
        %v989 = vsel %vm349, %v987, 0
        %991 = vmatprep.subr.bf16.mxu0 0
        %992 = vmatpush1.bf16.msra.mxu0 0
        %993 = vmatprep.subr.bf16.mxu0 0
        %994 = vmatpush1.bf16.msra.mxu0 0
        %995 = vmatprep.subr.bf16.mxu0 0
        %996 = vmatpush1.bf16.msra.mxu0 0
        %997 = vmatprep.subr.bf16.mxu0 0
        %998 = vmatpush1.bf16.msra.mxu0 0
        %999 = vmatprep.subr.bf16.mxu0 0
        %1000 = vmatpush1.bf16.msra.mxu0 0
        %1001 = vmatprep.subr.bf16.mxu0 0
        %1002 = vmatpush1.bf16.msra.mxu0 0
        %1003 = vmatprep.subr.bf16.mxu0 0
        %1004 = vmatpush1.bf16.msra.mxu0 0
        %1005 = vmatprep.subr.bf16.mxu0 %v450
        %1006 = vmatpush1.bf16.msra.mxu0 %v447
        %1007 = vmatprep.subr.bf16.mxu0 0
        %1008 = vmatpush2.bf16.msra.mxu0 0
        %1009 = vmatprep.subr.bf16.mxu0 0
        %1010 = vmatpush2.bf16.msra.mxu0 0
        %1011 = vmatprep.subr.bf16.mxu0 0
        %1012 = vmatpush2.bf16.msra.mxu0 0
        %1013 = vmatprep.subr.bf16.mxu0 0
        %1014 = vmatpush2.bf16.msra.mxu0 0
        %1015 = vmatprep.subr.bf16.mxu0 0
        %1016 = vmatpush2.bf16.msra.mxu0 0
        %1017 = vmatprep.subr.bf16.mxu0 0
        %1018 = vmatpush2.bf16.msra.mxu0 0
        %1019 = vmatprep.subr.bf16.mxu0 0
        %1020 = vmatpush2.bf16.msra.mxu0 0
        %1021 = vmatprep.subr.bf16.mxu0 0
        %1022 = vmatpush2.bf16.msra.mxu0 0
        %1023 = vmatprep.mubr.bf16.mxu0 0
        %1024 = vmatmul.mubr.bf16.gmra.mxu0 %v989
        %v1025 = vpop.f32.mrf.mxu0
        %v1026 = vadd.f32 0.0, %v1025
        %v1027 = vpop.f32.mrf.mxu0
        %v1028 = vadd.f32 0.0, %v1027
        %v1029 = vpop.f32.mrf.mxu0
        %v1030 = vpop.f32.mrf.mxu0
        %1031 = vdwg.mxu0
        %1032 = vrot.lane.b32.xlu0 %v1026, 111
        %v1033 = vpop.permute.xlu0 %1032
        %1034 = vrot.lane.b32.xlu0 %v1028, 111
        %v1035 = vpop.permute.xlu0 %1034
        %vm1036 = vcmp.lt.s32.totalorder %v498, 111
        %v1037 = vsel %vm1036, %v1033, %v1035
        %v1038 = vsel %vm1036, %v1035, %v1033
        %s1039 = scalar_lea.vmem %s5, 16
        %v1040 = vld [vmem:[%s1039] ss:$8 sm:$0x3]
        %v1042 = vlaneseq
        %v1043 = vshrl.u32 %v1042, 7
        %v1044 = vsub.s32 0, %v1043
        %v1045 = vrot.slane %v1040, %v1044
        %v1046 = vlaneseq
        %v1047 = vshrl.u32 %v1046, 7
        %v1048 = vsub.s32 1, %v1047
        %v1049 = vrot.slane %v1040, %v1048
        %v1052 = vmul.f32 %v1037, %v1045
        %v1053 = vmul.f32 %v1038, %v1049
        %v1054 = vadd.f32 %v984, %v1052
        %v1055 = vadd.f32 %v985, %v1053
        %v1056 = vld [vmem:[%s6] sm:$0xf]
        %1058 = vset.pattern.permute.xlu0 0
        %1059 = vperm.xlu0 %1058, %v1056
        %v1060 = vpop.permute.xlu0 %1059
        %v1062 = vadd.f32 %v1054, %v1060
        %v1063 = vadd.f32 %v1055, %v1060
        %v1064 = vmax.f32 %v1062, 0.0
        %v1065 = vmax.f32 %v1063, 0.0
        %v1066 = vpack.c.bf16 %v1064, %v1064
        %v1067 = vpack.c.bf16 %v1065, %v1065
        %v1068 = vld [vmem:[%s7] sm:$0xf]
        %v1069 = vld [vmem:[%s7 + $0x4] sm:$0xf]
        %v1070 = vld [vmem:[%s8] sm:$0xff]
        %v1071 = vld [vmem:[%s8 + $0x8] sm:$0xff]
        %1073 = vset.pattern.permute.xlu0 0
        %1074 = vperm.xlu0 %1073, %v1070
        %v1075 = vpop.permute.xlu0 %1074
        %1078 = vset.pattern.permute.xlu0 0
        %1079 = vperm.xlu0 %1078, %v1071
        %v1080 = vpop.permute.xlu0 %1079
        %v1084 = vunpack.c.l.b16 %v1068
        %v1085 = vunpack.c.l.b16 %v1069
        %v1086 = vpack.c.b16 %v1085, %v1084
        %v1088 = vsel %vm349, %v1086, 0
        %v1091 = vsel %vm356, %v1066, 0
        %v1094 = vsel %vm356, %v1067, 0
        %1096 = vmatprep.subr.bf16.mxu0 0
        %1097 = vmatpush1.bf16.msra.mxu0 0
        %1098 = vmatprep.subr.bf16.mxu0 0
        %1099 = vmatpush1.bf16.msra.mxu0 0
        %1100 = vmatprep.subr.bf16.mxu0 0
        %1101 = vmatpush1.bf16.msra.mxu0 0
        %1102 = vmatprep.subr.bf16.mxu0 0
        %1103 = vmatpush1.bf16.msra.mxu0 0
        %1104 = vmatprep.subr.bf16.mxu0 0
        %1105 = vmatpush1.bf16.msra.mxu0 0
        %1106 = vmatprep.subr.bf16.mxu0 0
        %1107 = vmatpush1.bf16.msra.mxu0 0
        %1108 = vmatprep.subr.bf16.mxu0 0
        %1109 = vmatpush1.bf16.msra.mxu0 0
        %1110 = vmatprep.subr.bf16.mxu0 %v1094
        %1111 = vmatpush1.bf16.msra.mxu0 %v1091
        %1112 = vmatprep.subr.bf16.mxu0 0
        %1113 = vmatpush2.bf16.msra.mxu0 0
        %1114 = vmatprep.subr.bf16.mxu0 0
        %1115 = vmatpush2.bf16.msra.mxu0 0
        %1116 = vmatprep.subr.bf16.mxu0 0
        %1117 = vmatpush2.bf16.msra.mxu0 0
        %1118 = vmatprep.subr.bf16.mxu0 0
        %1119 = vmatpush2.bf16.msra.mxu0 0
        %1120 = vmatprep.subr.bf16.mxu0 0
        %1121 = vmatpush2.bf16.msra.mxu0 0
        %1122 = vmatprep.subr.bf16.mxu0 0
        %1123 = vmatpush2.bf16.msra.mxu0 0
        %1124 = vmatprep.subr.bf16.mxu0 0
        %1125 = vmatpush2.bf16.msra.mxu0 0
        %1126 = vmatprep.subr.bf16.mxu0 0
        %1127 = vmatpush2.bf16.msra.mxu0 0
        %1128 = vmatprep.mubr.bf16.mxu0 0
        %1129 = vmatmul.mubr.bf16.gmra.mxu0 %v1088
        %v1130 = vpop.f32.mrf.mxu0
        %v1131 = vadd.f32 %v1075, %v1130
        %v1132 = vpop.f32.mrf.mxu0
        %v1133 = vadd.f32 %v1075, %v1132
        %v1134 = vpop.f32.mrf.mxu0
        %v1135 = vadd.f32 %v1080, %v1134
        %v1136 = vpop.f32.mrf.mxu0
        %v1137 = vadd.f32 %v1080, %v1136
        %1138 = vdwg.mxu0
        %v1139 = vadd.f32 %v1131, %v426
        %v1140 = vadd.f32 %v1133, %v427
        %v1141 = vadd.f32 %v1135, %v428
        %v1142 = vadd.f32 %v1137, %v429
        %v1143 = vmax.f32 %v1139, 0.0
        %v1144 = vmax.f32 %v1140, 0.0
        %v1145 = vmax.f32 %v1141, 0.0
        %v1146 = vmax.f32 %v1142, 0.0
        %1147 = vst [vmem:[%s325] sm:$0xff] %v1143
        %1148 = vst [vmem:[%s325 + $0x8] sm:$0xff] %v1144
        %1149 = vst [vmem:[%s325 + $0x10] sm:$0xff] %v1145
        %1150 = vst [vmem:[%s325 + $0x18] sm:$0xff] %v1146
        %s1151 = sand.u32 %s225, 1
        %s1152 = scalar_lea.sflag [#allocation3], %s1151
        %s1153 = sand.u32 %s225, 1
        %s1154 = smul.addr %s1153, 32
        %s1155 = scalar_lea.vmem [#allocation2], %s1154
        // Predicated region
        $region57: #{tpu_custom_call.1} parent=55 // pred_check
          %p1156 = pneg %p235
        $region58: #{tpu_custom_call.1} parent=55 // pred_check_branch
          %1158 = sbr.rel (%p1156) target = $region60
        $region59: #{tpu_custom_call.1} parent=55 // pred_region
          %s1160 = ssub.s32 512, 512
          %1161 = vsyncadd %s1152, %s1160
          %s1162 = smul.addr %s23, 4
          %s1163 = smul.addr %s1162, 128
          %s1164 = scalar_lea.hbm %s9, %s1163
          %s1165 = sshll.u32 %s1155, 4
          %s1166 = int_to_ptr.vmem [resolvable:$true] %s1165
          %1171 = dma.vmem_to_hbm [thread:$0]  %s1166, 512, %s1164, %s1152, 256, 256, 16
        $region60: #{tpu_custom_call.1} parent=55 // pred_fallthru
          _
      $region56: #{tpu_custom_call.1} parent=5 // pred_fallthru
        _
      %p1172 = scmp.le.s32.totalorder 2, %s18
      // Predicated region
      $region61: #{tpu_custom_call.1} parent=5 // pred_check
        %p1173 = pneg %p1172
      $region62: #{tpu_custom_call.1} parent=5 // pred_check_branch
        %1175 = sbr.rel (%p1173) target = $region64
      $region63: #{tpu_custom_call.1} parent=5 // pred_region
        %s1176 = ssub.s32 %s18, 2
        // Predicated region
        $region65: #{tpu_custom_call.1} parent=63 // pred_check
          %p1177 = pneg %p241
        $region66: #{tpu_custom_call.1} parent=63 // pred_check_branch
          %1179 = sbr.rel (%p1177) target = $region68
        $region67: #{tpu_custom_call.1} parent=63 // pred_region
          %s1180 = sand.u32 %s226, 1
          %s1181 = scalar_lea.sflag [#allocation3], %s1180
          %s1182 = sand.u32 %s226, 1
          %s1183 = smul.addr %s1182, 32
          %s1184 = scalar_lea.vmem [#allocation2], %s1183
          %1185 = dma.done %s1181, 512
        $region68: #{tpu_custom_call.1} parent=63 // pred_fallthru
          _
      $region64: #{tpu_custom_call.1} parent=5 // pred_fallthru
        _
    $region6: #{tpu_custom_call.1} parent=1 // loop_footer
      %s22 = sadd.s32 1, %s18
    $region7: #{tpu_custom_call.1} parent=1 // loop_footer_branch
      %17 = sbr.rel target = $region3
    $region8: #{tpu_custom_call.1} parent=1 // loop_exit
      _
    %1186 = vsyncpa [#allocation3], 1
    %s1187 = scalar_lea.sflag [#allocation3], 1
    %1188 = vsyncpa %s1187, 1

</llo_original>
